<compile_context>
chip_gen: v6e
topology: v6e:2x2x1
jax: 0.10.0
libtpu: 0.0.40
codegen_flags: <defaults>
</compile_context>

<pallas_src>
import functools

import jax
import jax.numpy as jnp
import numpy as np
from jax import lax
from jax.experimental import pallas as pl
from jax.experimental.pallas import tpu as pltpu

# ---------------------------------------------------------------------------
# Config (SMALL, consistent with the module: configs.n_estimators / max_depth /
# learning_rate). Input x is NCHW like PyTorch; flattened to (B, F).
# ---------------------------------------------------------------------------
BATCH, CH, H, W = 256, 4, 8, 8        # batch 256
FEATS = CH * H * W                    # F = 256 after flatten
N_EST = 8                             # configs.n_estimators
DEPTH = 3                             # configs.max_depth
LR = 0.1                              # configs.learning_rate (folded into leaves)
BASE_SCORE = 0.5                      # XGBoost default base_score
N_NODES = 2 ** DEPTH - 1              # internal nodes per tree (7)
N_LEAVES = 2 ** DEPTH                 # leaves per tree (8)
TN = N_EST * N_NODES                  # 56 (tree, node) slots
TL = N_EST * N_LEAVES                 # 64 (tree, leaf) slots
TNP = 128                             # padded node dim (multiple of 128)
TLP = 128                             # padded leaf dim (multiple of 128)
BIAS_NODE = TN                        # padded node slot used as always-true bias


def _pick_bm():
    """Batch tile per chip generation.

    Dual-TC v7x: two parallel grid steps of 128 lanes (one per core).
    Single-TC v5e/v6e: one step of 256 lanes (fills the MXU, halves per-step
    fixed overhead on this latency-bound kernel).
    """
    try:
        kind = jax.devices()[0].device_kind.lower()
    except Exception:
        kind = ""
    return 128 if "7" in kind else 256


# ---------------------------------------------------------------------------
# Pallas kernel: boosted-forest evaluation (batch in lanes everywhere)
# ---------------------------------------------------------------------------
def xgb_forest_kernel(x_ref, w_ref, thr_ref, a_ref, o_ref):
    x_bf = x_ref[...].astype(jnp.bfloat16)                                # (BM, F)
    # 1. route the feature of every (tree, node) slot via one-hot NT matmul (MXU)
    fv = lax.dot_general(w_ref[...], x_bf,
                         dimension_numbers=(((1,), (1,)), ((), ())),
                         preferred_element_type=jnp.float32)              # (TNP, BM)
    # 2. split decisions (1.0 = go right); bias node slot (thr=-1e30) always fires
    d = (fv > thr_ref[...]).astype(jnp.bfloat16)                          # (TNP, BM)
    # 3. single fused routing matmul over all DEPTH levels; bias + leaf values
    #    are already folded into a_ref at build time
    vals = jnp.dot(a_ref[...], d,
                   preferred_element_type=jnp.float32)                    # (D*TLP, BM)
    ind = vals[0:TLP, :]                                                  # level 0 (carries leaf values)
    for l in range(1, DEPTH):                                             # static unroll
        ind = ind * vals[l * TLP:(l + 1) * TLP, :]                        # (TLP, BM)
    # 4. boosted sum over all trees' leaves + base score (sublane sum, XLU)
    o_ref[...] = jnp.sum(ind, axis=0, keepdims=True) + BASE_SCORE         # (1, BM)


@functools.partial(jax.jit, static_argnames=("bm",))
def xgb_predict(x_flat, w_selT, thr_col, a_catT, *, bm):
    B = x_flat.shape[0]
    b_pad = pl.cdiv(B, bm) * bm
    if b_pad != B:                                  # no-op at B=256 for either bm
        x_flat = jnp.pad(x_flat, ((0, b_pad - B), (0, 0)))
    grid = (b_pad // bm,)
    out = pl.pallas_call(
        xgb_forest_kernel,
        out_shape=jax.ShapeDtypeStruct((1, b_pad), jnp.float32),
        grid_spec=pltpu.PrefetchScalarGridSpec(
            num_scalar_prefetch=0,
            grid=grid,
            in_specs=[
                pl.BlockSpec((bm, FEATS), lambda i: (i, 0)),           # x tile (B in sublanes)
                pl.BlockSpec((TNP, FEATS), lambda i: (0, 0)),          # W_sel (bf16, invariant)
                pl.BlockSpec((TNP, 1), lambda i: (0, 0)),              # thresholds (f32)
                pl.BlockSpec((DEPTH * TLP, TNP), lambda i: (0, 0)),    # fused A (bf16, invariant)
            ],
            out_specs=pl.BlockSpec((1, bm), lambda i: (0, i)),         # lane-dense output
        ),
        compiler_params=pltpu.CompilerParams(
            dimension_semantics=("parallel",)),
    )(x_flat, w_selT, thr_col, a_catT)
    return out[0, :B]                              # (B,) float32, like xgb.predict()


# ---------------------------------------------------------------------------
# Deterministic synthetic forest parameters (transposed, zero-padded, fused)
# ---------------------------------------------------------------------------
def build_forest_params(key):
    k_feat, k_thr, k_leaf = jax.random.split(key, 3)
    feat_idx = np.asarray(jax.random.randint(k_feat, (N_EST, N_NODES), 0, FEATS))
    # Snap thresholds / leaf values to bf16-exact grids (exact forest arithmetic).
    thr = np.round(np.asarray(jax.random.normal(k_thr, (N_EST, N_NODES))) * 8.0) / 8.0 \
        + 1.0 / 16.0                                        # never ties with data grid
    leaf = np.round(np.asarray(jax.random.normal(k_leaf, (N_EST, N_LEAVES))) * LR * 128.0) / 128.0

    # one-hot feature selector, transposed & padded: (TNP, F), stored bf16 (0/1 exact)
    w_selT = np.zeros((TNP, FEATS), np.float32)
    w_selT[np.arange(TN), feat_idx.reshape(-1)] = 1.0

    thr_col = np.full((TNP, 1), 1e30, np.float32)           # padded nodes never fire
    thr_col[:TN, 0] = thr.reshape(-1)
    thr_col[BIAS_NODE, 0] = -1e30                           # bias slot always fires (d=1)

    # per-level routing: A_l[node, leaf] = +1 (right branch) / -1 (left, bias 1)
    a_lvl = np.zeros((DEPTH, N_NODES, N_LEAVES), np.float32)
    c_lvl = np.zeros((DEPTH, N_LEAVES), np.float32)
    for l in range(DEPTH):
        for j in range(N_LEAVES):
            node = (2 ** l - 1) + (j >> (DEPTH - l))        # ancestor of leaf j at level l
            if (j >> (DEPTH - 1 - l)) & 1:
                a_lvl[l, node, j] = 1.0                     # contributes d
            else:
                a_lvl[l, node, j] = -1.0                    # contributes 1 - d
                c_lvl[l, j] = 1.0

    eye_t = np.eye(N_EST, dtype=np.float32)
    a_catT = np.zeros((DEPTH * TLP, TNP), np.float32)       # levels stacked along sublanes
    for l in range(DEPTH):
        big_aT = np.kron(eye_t, a_lvl[l]).T                 # (TL, TN) block-diag over trees
        a_catT[l * TLP:l * TLP + TL, :TN] = big_aT
        # bias folded into the always-true node column (d[BIAS_NODE] == 1)
        a_catT[l * TLP:l * TLP + TL, BIAS_NODE] = np.tile(c_lvl[l], N_EST)
    # leaf values folded into the level-0 rows (±leaf / leaf / 0, all bf16-exact)
    a_catT[0:TL, :] *= leaf.reshape(TL, 1)

    return (jnp.asarray(w_selT, jnp.bfloat16), jnp.asarray(thr_col),
            jnp.asarray(a_catT, jnp.bfloat16), feat_idx, thr, leaf)


# ---------------------------------------------------------------------------
# Independent reference: per-sample tree walk in numpy float64
# (go right on x > thr; data/threshold grids guarantee no ties)
# ---------------------------------------------------------------------------
def reference_predict(x_flat, feat_idx, thresholds, leaf_vals):
    xf = np.asarray(x_flat, np.float64)
    out = np.full((xf.shape[0],), BASE_SCORE, np.float64)
    for t in range(N_EST):
        for b in range(xf.shape[0]):
            node = 0
            for _ in range(DEPTH):
                go_right = xf[b, int(feat_idx[t, node])] > float(thresholds[t, node])
                node = 2 * node + (2 if go_right else 1)
            out[b] += float(leaf_vals[t, node - (2 ** DEPTH - 1)])
    return out


# ---------------------------------------------------------------------------
if __name__ == "__main__":
    key = jax.random.PRNGKey(0)
    k_x, k_params = jax.random.split(key)

    # NCHW input, snapped to a bf16-exact grid (multiples of 1/8)
    x = jnp.round(jax.random.normal(k_x, (BATCH, CH, H, W), dtype=jnp.float32) * 8.0) / 8.0
    x_flat = x.reshape(BATCH, -1)                           # x.view(B, -1)

    (w_selT, thr_col, a_catT,
     feat_idx_np, thr_np, leaf_np) = build_forest_params(k_params)

    bm = _pick_bm()
    out = xgb_predict(x_flat, w_selT, thr_col, a_catT, bm=bm)
    out = jax.block_until_ready(out)                        # (B,) float32

    ref = reference_predict(np.asarray(x_flat), feat_idx_np, thr_np, leaf_np)
    np.testing.assert_allclose(np.asarray(out, np.float64), ref, rtol=1e-5, atol=1e-5)

    print("KERNEL_OK")
</pallas_src>

<mosaic_0001>
module attributes {stable_mosaic.version = 11 : i64} {
  func.func @xgb_forest_kernel(%arg0: i32, %arg1: memref<256x256xf32, #tpu.memory_space<vmem>>, %arg2: memref<128x256xbf16, #tpu.memory_space<vmem>>, %arg3: memref<128x1xf32, #tpu.memory_space<vmem>>, %arg4: memref<384x128xbf16, #tpu.memory_space<vmem>>, %arg5: memref<1x256xf32, #tpu.memory_space<vmem>>) attributes {dimension_semantics = [#tpu.dimension_semantics<parallel>], iteration_bounds = array<i64: 1>, scalar_prefetch = 0 : i64, scratch_operands = 0 : i64, tpu.core_type = #tpu.core_type<tc>, window_params = [{transform_indices = @transform_0, window_bounds = array<i64: 256, 256>}, {pipeline_mode = #tpu.pipeline_mode<synchronous>, transform_indices = @transform_1, window_bounds = array<i64: 128, 256>}, {pipeline_mode = #tpu.pipeline_mode<synchronous>, transform_indices = @transform_2, window_bounds = array<i64: 128, 1>}, {pipeline_mode = #tpu.pipeline_mode<synchronous>, transform_indices = @transform_3, window_bounds = array<i64: 384, 128>}, {transform_indices = @transform_4, window_bounds = array<i64: 1, 256>}]} {
    %c0 = arith.constant 0 : index
    %c0_0 = arith.constant 0 : index
    %0 = vector.load %arg1[%c0, %c0_0] : memref<256x256xf32, #tpu.memory_space<vmem>>, vector<256x256xf32>
    %1 = arith.truncf %0 : vector<256x256xf32> to vector<256x256xbf16>
    %c0_1 = arith.constant 0 : index
    %c0_2 = arith.constant 0 : index
    %2 = vector.load %arg2[%c0_1, %c0_2] : memref<128x256xbf16, #tpu.memory_space<vmem>>, vector<128x256xbf16>
    %cst = arith.constant dense<0.000000e+00> : vector<128x256xf32>
    %3 = tpu.matmul %2, %1, %cst {dimension_numbers = #tpu.dot_dimension_numbers<[1], [1], [0], [0], [0, 0, 1, 0], [], []>} : vector<128x256xbf16>, vector<256x256xbf16>, vector<128x256xf32> -> vector<128x256xf32>
    %c0_3 = arith.constant 0 : index
    %c0_4 = arith.constant 0 : index
    %4 = vector.load %arg3[%c0_3, %c0_4] : memref<128x1xf32, #tpu.memory_space<vmem>>, vector<128x1xf32>
    %5 = vector.broadcast %4 : vector<128x1xf32> to vector<128x256xf32>
    %6 = arith.cmpf ogt, %3, %5 : vector<128x256xf32>
    %7 = arith.extui %6 : vector<128x256xi1> to vector<128x256xi32>
    %8 = arith.sitofp %7 : vector<128x256xi32> to vector<128x256xf32>
    %9 = arith.truncf %8 : vector<128x256xf32> to vector<128x256xbf16>
    %c0_5 = arith.constant 0 : index
    %c0_6 = arith.constant 0 : index
    %10 = vector.load %arg4[%c0_5, %c0_6] : memref<384x128xbf16, #tpu.memory_space<vmem>>, vector<384x128xbf16>
    %cst_7 = arith.constant dense<0.000000e+00> : vector<384x256xf32>
    %11 = tpu.matmul %10, %9, %cst_7 {dimension_numbers = #tpu.dot_dimension_numbers<[1], [0], [0], [1], [0, 0, 1, 1], [], []>} : vector<384x128xbf16>, vector<128x256xbf16>, vector<384x256xf32> -> vector<384x256xf32>
    %12 = vector.extract_strided_slice %11 {offsets = [0, 0], sizes = [128, 256], strides = [1, 1]} : vector<384x256xf32> to vector<128x256xf32>
    %13 = vector.extract_strided_slice %11 {offsets = [128, 0], sizes = [128, 256], strides = [1, 1]} : vector<384x256xf32> to vector<128x256xf32>
    %14 = arith.mulf %12, %13 : vector<128x256xf32>
    %15 = vector.extract_strided_slice %11 {offsets = [256, 0], sizes = [128, 256], strides = [1, 1]} : vector<384x256xf32> to vector<128x256xf32>
    %16 = arith.mulf %14, %15 : vector<128x256xf32>
    %cst_8 = arith.constant dense<0.000000e+00> : vector<256xf32>
    %17 = vector.multi_reduction <add>, %16, %cst_8 [0] : vector<128x256xf32> to vector<256xf32>
    %18 = vector.shape_cast %17 : vector<256xf32> to vector<1x256xf32>
    %cst_9 = arith.constant 5.000000e-01 : f32
    %19 = vector.broadcast %cst_9 : f32 to vector<1x256xf32>
    %20 = arith.addf %18, %19 : vector<1x256xf32>
    %c0_10 = arith.constant 0 : index
    %c0_11 = arith.constant 0 : index
    %21 = vector.load %arg5[%c0_10, %c0_11] : memref<1x256xf32, #tpu.memory_space<vmem>>, vector<1x256xf32>
    tpu.vector_store %arg5[%c0_10, %c0_11], %20 {strides = array<i32>} : memref<1x256xf32, #tpu.memory_space<vmem>>, vector<1x256xf32>,
    return
  }
  func.func @transform_0(%arg0: i32) -> (i32, i32) {
    %c0_i32 = arith.constant 0 : i32
    %c0_i32_0 = arith.constant 0 : i32
    return %arg0, %c0_i32 : i32, i32
  }
  func.func @transform_1(%arg0: i32) -> (i32, i32) {
    %c0_i32 = arith.constant 0 : i32
    %c0_i32_0 = arith.constant 0 : i32
    %c0_i32_1 = arith.constant 0 : i32
    return %c0_i32, %c0_i32_0 : i32, i32
  }
  func.func @transform_2(%arg0: i32) -> (i32, i32) {
    %c0_i32 = arith.constant 0 : i32
    %c0_i32_0 = arith.constant 0 : i32
    %c0_i32_1 = arith.constant 0 : i32
    return %c0_i32, %c0_i32_0 : i32, i32
  }
  func.func @transform_3(%arg0: i32) -> (i32, i32) {
    %c0_i32 = arith.constant 0 : i32
    %c0_i32_0 = arith.constant 0 : i32
    %c0_i32_1 = arith.constant 0 : i32
    return %c0_i32, %c0_i32_0 : i32, i32
  }
  func.func @transform_4(%arg0: i32) -> (i32, i32) {
    %c0_i32 = arith.constant 0 : i32
    %c0_i32_0 = arith.constant 0 : i32
    return %c0_i32, %arg0 : i32, i32
  }
}

</mosaic_0001>

<llo_original>
// kernel: xgb_predict.1
$region0: #{xgb_predict.1}
  #allocation0 [shape = 'u32[]', space=smem, size = 0x4, offset = 0x4, fixed_abs, tag = 'smem constant byte address 0x4 - core index']
  #allocation1 [shape = 'u32[144,128]{1,0:T(1,128)}', space=vmem, size = 0x12000, scoped, tag = 'internal scratch']
  %s0 = inlined_call_operand.hbm [shape: f32[256,256], index: 0, kind: input, shape index: {}]
  %s1 = inlined_call_operand.vmem [shape: bf16[128,256], index: 1, kind: input, shape index: {}]
  %s2 = inlined_call_operand.vmem [shape: f32[128,1], index: 2, kind: input, shape index: {}]
  %s3 = inlined_call_operand.hbm [shape: bf16[384,128], index: 3, kind: input, shape index: {}]
  %s4 = inlined_call_operand.hbm [shape: f32[1,256], index: 4, kind: output, shape index: {}]
  %s5 = sld [smem:[#allocation0]]
  $region34: #{xgb_predict.1} parent=0
    _
  %s7 = ssub.s32 1, %s5
  %s8 = scalar_select 0, %s7, %s5
  $region1: #{xgb_predict.1} parent=0
    #allocation2 [shape = 'u8[262144]{0}', space=vmem, size = 0x40000, scoped, tag = 'input window, operand 0, single buffered']
    #allocation3 [shape = 's32[1]{0}', space=sflag, size = 0x4, scoped, tag = 'scoped memory for xgb_predict.1']
    #allocation4 [shape = 's32[1]{0}', space=sflag, size = 0x4, scoped, tag = 'scoped memory for xgb_predict.1']
    #allocation5 [shape = 'u8[98304]{0}', space=vmem, size = 0x18000, scoped, tag = 'input window, operand 3, single buffered']
    #allocation6 [shape = 's32[1]{0}', space=sflag, size = 0x4, scoped, tag = 'scoped memory for xgb_predict.1']
    #allocation7 [shape = 'u8[1024]{0}', space=vmem, size = 0x400, scoped, tag = 'output window, operand 0, single buffered']
    %9 = vsyncpa [#allocation3], 0
    %10 = vsyncpa [#allocation6], 0
    %11 = vsyncpa [#allocation4], 0
    // Predicated region
    $region2: #{xgb_predict.1} parent=1 // pred_check
      _
    $region3: #{xgb_predict.1} parent=1 // pred_check_branch
      %13 = sbr.rel (0) target = $region5
    $region4: #{xgb_predict.1} parent=1 // pred_region
      %s15 = ssub.s32 8192, 8192
      %16 = vsyncadd [#allocation3], %s15
      %s17 = sshll.u32 [#allocation2], 4
      %s18 = int_to_ptr.vmem [resolvable:$true] %s17
      %23 = dma.hbm_to_vmem [thread:$0]  %s0, 8192, %s18, [#allocation3], 256, 256, 16
    $region5: #{xgb_predict.1} parent=1 // pred_fallthru
      _
    // Predicated region
    $region6: #{xgb_predict.1} parent=1 // pred_check
      _
    $region7: #{xgb_predict.1} parent=1 // pred_check_branch
      %25 = sbr.rel (0) target = $region9
    $region8: #{xgb_predict.1} parent=1 // pred_region
      _
    $region9: #{xgb_predict.1} parent=1 // pred_fallthru
      _
    // Predicated region
    $region10: #{xgb_predict.1} parent=1 // pred_check
      _
    $region11: #{xgb_predict.1} parent=1 // pred_check_branch
      %27 = sbr.rel (0) target = $region13
    $region12: #{xgb_predict.1} parent=1 // pred_region
      _
    $region13: #{xgb_predict.1} parent=1 // pred_fallthru
      _
    // Predicated region
    $region14: #{xgb_predict.1} parent=1 // pred_check
      _
    $region15: #{xgb_predict.1} parent=1 // pred_check_branch
      %29 = sbr.rel (0) target = $region17
    $region16: #{xgb_predict.1} parent=1 // pred_region
      %s31 = ssub.s32 3072, 3072
      %32 = vsyncadd [#allocation6], %s31
      %s33 = sshll.u32 [#allocation5], 4
      %s34 = int_to_ptr.vmem [resolvable:$true] %s33
      %39 = dma.hbm_to_vmem [thread:$0]  %s3, 3072, %s34, [#allocation6], 64, 64, 4
    $region17: #{xgb_predict.1} parent=1 // pred_fallthru
      _
    // Predicated region
    $region18: #{xgb_predict.1} parent=1 // pred_check
      _
    $region19: #{xgb_predict.1} parent=1 // pred_check_branch
      %41 = sbr.rel (0) target = $region21
    $region20: #{xgb_predict.1} parent=1 // pred_region
      %42 = dma.done [#allocation3], 8192
    $region21: #{xgb_predict.1} parent=1 // pred_fallthru
      _
    // Predicated region
    $region22: #{xgb_predict.1} parent=1 // pred_check
      _
    $region23: #{xgb_predict.1} parent=1 // pred_check_branch
      %44 = sbr.rel (0) target = $region25
    $region24: #{xgb_predict.1} parent=1 // pred_region
      %45 = dma.done [#allocation6], 3072
    $region25: #{xgb_predict.1} parent=1 // pred_fallthru
      _
    %v47 = vld [vmem:[#allocation2] sm:$0xff]
    %v48 = vld [vmem:[#allocation2 + $0x8] sm:$0xff]
    %v49 = vld [vmem:[#allocation2 + $0x10] sm:$0xff]
    %v50 = vld [vmem:[#allocation2 + $0x18] sm:$0xff]
    %v51 = vld [vmem:[#allocation2 + $0x20] sm:$0xff]
    %v52 = vld [vmem:[#allocation2 + $0x28] sm:$0xff]
    %v53 = vld [vmem:[#allocation2 + $0x30] sm:$0xff]
    %v54 = vld [vmem:[#allocation2 + $0x38] sm:$0xff]
    %v55 = vld [vmem:[#allocation2 + $0x40] sm:$0xff]
    %v56 = vld [vmem:[#allocation2 + $0x48] sm:$0xff]
    %v57 = vld [vmem:[#allocation2 + $0x50] sm:$0xff]
    %v58 = vld [vmem:[#allocation2 + $0x58] sm:$0xff]
    %v59 = vld [vmem:[#allocation2 + $0x60] sm:$0xff]
    %v60 = vld [vmem:[#allocation2 + $0x68] sm:$0xff]
    %v61 = vld [vmem:[#allocation2 + $0x70] sm:$0xff]
    %v62 = vld [vmem:[#allocation2 + $0x78] sm:$0xff]
    %v63 = vld [vmem:[#allocation2 + $0x80] sm:$0xff]
    %v64 = vld [vmem:[#allocation2 + $0x88] sm:$0xff]
    %v65 = vld [vmem:[#allocation2 + $0x90] sm:$0xff]
    %v66 = vld [vmem:[#allocation2 + $0x98] sm:$0xff]
    %v67 = vld [vmem:[#allocation2 + $0xa0] sm:$0xff]
    %v68 = vld [vmem:[#allocation2 + $0xa8] sm:$0xff]
    %v69 = vld [vmem:[#allocation2 + $0xb0] sm:$0xff]
    %v70 = vld [vmem:[#allocation2 + $0xb8] sm:$0xff]
    %v71 = vld [vmem:[#allocation2 + $0xc0] sm:$0xff]
    %v72 = vld [vmem:[#allocation2 + $0xc8] sm:$0xff]
    %v73 = vld [vmem:[#allocation2 + $0xd0] sm:$0xff]
    %v74 = vld [vmem:[#allocation2 + $0xd8] sm:$0xff]
    %v75 = vld [vmem:[#allocation2 + $0xe0] sm:$0xff]
    %v76 = vld [vmem:[#allocation2 + $0xe8] sm:$0xff]
    %v77 = vld [vmem:[#allocation2 + $0xf0] sm:$0xff]
    %v78 = vld [vmem:[#allocation2 + $0xf8] sm:$0xff]
    %v79 = vld [vmem:[#allocation2 + $0x100] sm:$0xff]
    %v80 = vld [vmem:[#allocation2 + $0x108] sm:$0xff]
    %v81 = vld [vmem:[#allocation2 + $0x110] sm:$0xff]
    %v82 = vld [vmem:[#allocation2 + $0x118] sm:$0xff]
    %v83 = vld [vmem:[#allocation2 + $0x120] sm:$0xff]
    %v84 = vld [vmem:[#allocation2 + $0x128] sm:$0xff]
    %v85 = vld [vmem:[#allocation2 + $0x130] sm:$0xff]
    %v86 = vld [vmem:[#allocation2 + $0x138] sm:$0xff]
    %v87 = vld [vmem:[#allocation2 + $0x140] sm:$0xff]
    %v88 = vld [vmem:[#allocation2 + $0x148] sm:$0xff]
    %v89 = vld [vmem:[#allocation2 + $0x150] sm:$0xff]
    %v90 = vld [vmem:[#allocation2 + $0x158] sm:$0xff]
    %v91 = vld [vmem:[#allocation2 + $0x160] sm:$0xff]
    %v92 = vld [vmem:[#allocation2 + $0x168] sm:$0xff]
    %v93 = vld [vmem:[#allocation2 + $0x170] sm:$0xff]
    %v94 = vld [vmem:[#allocation2 + $0x178] sm:$0xff]
    %v95 = vld [vmem:[#allocation2 + $0x180] sm:$0xff]
    %v96 = vld [vmem:[#allocation2 + $0x188] sm:$0xff]
    %v97 = vld [vmem:[#allocation2 + $0x190] sm:$0xff]
    %v98 = vld [vmem:[#allocation2 + $0x198] sm:$0xff]
    %v99 = vld [vmem:[#allocation2 + $0x1a0] sm:$0xff]
    %v100 = vld [vmem:[#allocation2 + $0x1a8] sm:$0xff]
    %v101 = vld [vmem:[#allocation2 + $0x1b0] sm:$0xff]
    %v102 = vld [vmem:[#allocation2 + $0x1b8] sm:$0xff]
    %v103 = vld [vmem:[#allocation2 + $0x1c0] sm:$0xff]
    %v104 = vld [vmem:[#allocation2 + $0x1c8] sm:$0xff]
    %v105 = vld [vmem:[#allocation2 + $0x1d0] sm:$0xff]
    %v106 = vld [vmem:[#allocation2 + $0x1d8] sm:$0xff]
    %v107 = vld [vmem:[#allocation2 + $0x1e0] sm:$0xff]
    %v108 = vld [vmem:[#allocation2 + $0x1e8] sm:$0xff]
    %v109 = vld [vmem:[#allocation2 + $0x1f0] sm:$0xff]
    %v110 = vld [vmem:[#allocation2 + $0x1f8] sm:$0xff]
    %v111 = vpack.c.bf16 %v49, %v47
    %v112 = vpack.c.bf16 %v50, %v48
    %v113 = vpack.c.bf16 %v53, %v51
    %v114 = vpack.c.bf16 %v54, %v52
    %v115 = vpack.c.bf16 %v57, %v55
    %v116 = vpack.c.bf16 %v58, %v56
    %v117 = vpack.c.bf16 %v61, %v59
    %v118 = vpack.c.bf16 %v62, %v60
    %v119 = vpack.c.bf16 %v65, %v63
    %v120 = vpack.c.bf16 %v66, %v64
    %v121 = vpack.c.bf16 %v69, %v67
    %v122 = vpack.c.bf16 %v70, %v68
    %v123 = vpack.c.bf16 %v73, %v71
    %v124 = vpack.c.bf16 %v74, %v72
    %v125 = vpack.c.bf16 %v77, %v75
    %v126 = vpack.c.bf16 %v78, %v76
    %v127 = vpack.c.bf16 %v81, %v79
    %v128 = vpack.c.bf16 %v82, %v80
    %v129 = vpack.c.bf16 %v85, %v83
    %v130 = vpack.c.bf16 %v86, %v84
    %v131 = vpack.c.bf16 %v89, %v87
    %v132 = vpack.c.bf16 %v90, %v88
    %v133 = vpack.c.bf16 %v93, %v91
    %v134 = vpack.c.bf16 %v94, %v92
    %v135 = vpack.c.bf16 %v97, %v95
    %v136 = vpack.c.bf16 %v98, %v96
    %v137 = vpack.c.bf16 %v101, %v99
    %v138 = vpack.c.bf16 %v102, %v100
    %v139 = vpack.c.bf16 %v105, %v103
    %v140 = vpack.c.bf16 %v106, %v104
    %v141 = vpack.c.bf16 %v109, %v107
    %v142 = vpack.c.bf16 %v110, %v108
    %v143 = vld [vmem:[%s1] sm:$0xff]
    %v144 = vld [vmem:[%s1 + $0x8] sm:$0xff]
    %v145 = vld [vmem:[%s1 + $0x10] sm:$0xff]
    %v146 = vld [vmem:[%s1 + $0x18] sm:$0xff]
    %v147 = vld [vmem:[%s1 + $0x20] sm:$0xff]
    %v148 = vld [vmem:[%s1 + $0x28] sm:$0xff]
    %v149 = vld [vmem:[%s1 + $0x30] sm:$0xff]
    %v150 = vld [vmem:[%s1 + $0x38] sm:$0xff]
    %v151 = vld [vmem:[%s1 + $0x40] sm:$0xff]
    %v152 = vld [vmem:[%s1 + $0x48] sm:$0xff]
    %v153 = vld [vmem:[%s1 + $0x50] sm:$0xff]
    %v154 = vld [vmem:[%s1 + $0x58] sm:$0xff]
    %v155 = vld [vmem:[%s1 + $0x60] sm:$0xff]
    %v156 = vld [vmem:[%s1 + $0x68] sm:$0xff]
    %v157 = vld [vmem:[%s1 + $0x70] sm:$0xff]
    %v158 = vld [vmem:[%s1 + $0x78] sm:$0xff]
    %v175 = vunpack.c.l.b16 %v143
    %v176 = vunpack.c.h.b16 %v143
    %v177 = vunpack.c.l.b16 %v144
    %v178 = vunpack.c.h.b16 %v144
    %v179 = vunpack.c.l.b16 %v145
    %v180 = vunpack.c.h.b16 %v145
    %v181 = vunpack.c.l.b16 %v146
    %v182 = vunpack.c.h.b16 %v146
    %v183 = vunpack.c.l.b16 %v147
    %v184 = vunpack.c.h.b16 %v147
    %v185 = vunpack.c.l.b16 %v148
    %v186 = vunpack.c.h.b16 %v148
    %v187 = vunpack.c.l.b16 %v149
    %v188 = vunpack.c.h.b16 %v149
    %v189 = vunpack.c.l.b16 %v150
    %v190 = vunpack.c.h.b16 %v150
    %v191 = vunpack.c.l.b16 %v151
    %v192 = vunpack.c.h.b16 %v151
    %v193 = vunpack.c.l.b16 %v152
    %v194 = vunpack.c.h.b16 %v152
    %v195 = vunpack.c.l.b16 %v153
    %v196 = vunpack.c.h.b16 %v153
    %v197 = vunpack.c.l.b16 %v154
    %v198 = vunpack.c.h.b16 %v154
    %v199 = vunpack.c.l.b16 %v155
    %v200 = vunpack.c.h.b16 %v155
    %v201 = vunpack.c.l.b16 %v156
    %v202 = vunpack.c.h.b16 %v156
    %v203 = vunpack.c.l.b16 %v157
    %v204 = vunpack.c.h.b16 %v157
    %v205 = vunpack.c.l.b16 %v158
    %v206 = vunpack.c.h.b16 %v158
    %v207 = vpack.c.b16 %v177, %v175
    %v208 = vpack.c.b16 %v178, %v176
    %v209 = vpack.c.b16 %v181, %v179
    %v210 = vpack.c.b16 %v182, %v180
    %v211 = vpack.c.b16 %v185, %v183
    %v212 = vpack.c.b16 %v186, %v184
    %v213 = vpack.c.b16 %v189, %v187
    %v214 = vpack.c.b16 %v190, %v188
    %v215 = vpack.c.b16 %v193, %v191
    %v216 = vpack.c.b16 %v194, %v192
    %v217 = vpack.c.b16 %v197, %v195
    %v218 = vpack.c.b16 %v198, %v196
    %v219 = vpack.c.b16 %v201, %v199
    %v220 = vpack.c.b16 %v202, %v200
    %v221 = vpack.c.b16 %v205, %v203
    %v222 = vpack.c.b16 %v206, %v204
    %239 = vmatprep.subr.bf16.mxu0 %v126
    %240 = vmatpush1.bf16.xpose.msra.mxu0 %v125
    %241 = vmatprep.subr.bf16.mxu0 %v124
    %242 = vmatpush1.bf16.xpose.msra.mxu0 %v123
    %243 = vmatprep.subr.bf16.mxu0 %v122
    %244 = vmatpush1.bf16.xpose.msra.mxu0 %v121
    %245 = vmatprep.subr.bf16.mxu0 %v120
    %246 = vmatpush1.bf16.xpose.msra.mxu0 %v119
    %247 = vmatprep.subr.bf16.mxu0 %v118
    %248 = vmatpush1.bf16.xpose.msra.mxu0 %v117
    %249 = vmatprep.subr.bf16.mxu0 %v116
    %250 = vmatpush1.bf16.xpose.msra.mxu0 %v115
    %251 = vmatprep.subr.bf16.mxu0 %v114
    %252 = vmatpush1.bf16.xpose.msra.mxu0 %v113
    %253 = vmatprep.subr.bf16.mxu0 %v112
    %254 = vmatpush1.bf16.xpose.msra.mxu0 %v111
    %255 = vmatprep.subr.bf16.mxu0 %v142
    %256 = vmatpush2.bf16.xpose.msra.mxu0 %v141
    %257 = vmatprep.subr.bf16.mxu0 %v140
    %258 = vmatpush2.bf16.xpose.msra.mxu0 %v139
    %259 = vmatprep.subr.bf16.mxu0 %v138
    %260 = vmatpush2.bf16.xpose.msra.mxu0 %v137
    %261 = vmatprep.subr.bf16.mxu0 %v136
    %262 = vmatpush2.bf16.xpose.msra.mxu0 %v135
    %263 = vmatprep.subr.bf16.mxu0 %v134
    %264 = vmatpush2.bf16.xpose.msra.mxu0 %v133
    %265 = vmatprep.subr.bf16.mxu0 %v132
    %266 = vmatpush2.bf16.xpose.msra.mxu0 %v131
    %267 = vmatprep.subr.bf16.mxu0 %v130
    %268 = vmatpush2.bf16.xpose.msra.mxu0 %v129
    %269 = vmatprep.subr.bf16.mxu0 %v128
    %270 = vmatpush2.bf16.xpose.msra.mxu0 %v127
    %271 = vmatprep.mubr.bf16.mxu0 %v208
    %272 = vmatmul.mubr.bf16.gmra.mxu0 %v207
    %v273 = vpop.f32.mrf.mxu0
    %v274 = vadd.f32 0.0, %v273
    %v275 = vpop.f32.mrf.mxu0
    %v276 = vadd.f32 0.0, %v275
    %v277 = vpop.f32.mrf.mxu0
    %v278 = vadd.f32 0.0, %v277
    %v279 = vpop.f32.mrf.mxu0
    %v280 = vadd.f32 0.0, %v279
    %281 = vmatprep.mubr.bf16.mxu0 %v210
    %282 = vmatmul.mubr.bf16.gmra.mxu0 %v209
    %v283 = vpop.f32.mrf.mxu0
    %v284 = vadd.f32 0.0, %v283
    %v285 = vpop.f32.mrf.mxu0
    %v286 = vadd.f32 0.0, %v285
    %v287 = vpop.f32.mrf.mxu0
    %v288 = vadd.f32 0.0, %v287
    %v289 = vpop.f32.mrf.mxu0
    %v290 = vadd.f32 0.0, %v289
    %291 = vmatprep.mubr.bf16.mxu0 %v212
    %292 = vmatmul.mubr.bf16.gmra.mxu0 %v211
    %v293 = vpop.f32.mrf.mxu0
    %v294 = vadd.f32 0.0, %v293
    %v295 = vpop.f32.mrf.mxu0
    %v296 = vadd.f32 0.0, %v295
    %v297 = vpop.f32.mrf.mxu0
    %v298 = vadd.f32 0.0, %v297
    %v299 = vpop.f32.mrf.mxu0
    %v300 = vadd.f32 0.0, %v299
    %301 = vmatprep.mubr.bf16.mxu0 %v214
    %302 = vmatmul.mubr.bf16.gmra.mxu0 %v213
    %v303 = vpop.f32.mrf.mxu0
    %v304 = vadd.f32 0.0, %v303
    %v305 = vpop.f32.mrf.mxu0
    %v306 = vadd.f32 0.0, %v305
    %v307 = vpop.f32.mrf.mxu0
    %v308 = vadd.f32 0.0, %v307
    %v309 = vpop.f32.mrf.mxu0
    %v310 = vadd.f32 0.0, %v309
    %311 = vmatprep.mubr.bf16.mxu0 %v216
    %312 = vmatmul.mubr.bf16.gmra.mxu0 %v215
    %v313 = vpop.f32.mrf.mxu0
    %v314 = vadd.f32 0.0, %v313
    %v315 = vpop.f32.mrf.mxu0
    %v316 = vadd.f32 0.0, %v315
    %v317 = vpop.f32.mrf.mxu0
    %v318 = vadd.f32 0.0, %v317
    %v319 = vpop.f32.mrf.mxu0
    %v320 = vadd.f32 0.0, %v319
    %321 = vmatprep.mubr.bf16.mxu0 %v218
    %322 = vmatmul.mubr.bf16.gmra.mxu0 %v217
    %v323 = vpop.f32.mrf.mxu0
    %v324 = vadd.f32 0.0, %v323
    %v325 = vpop.f32.mrf.mxu0
    %v326 = vadd.f32 0.0, %v325
    %v327 = vpop.f32.mrf.mxu0
    %v328 = vadd.f32 0.0, %v327
    %v329 = vpop.f32.mrf.mxu0
    %v330 = vadd.f32 0.0, %v329
    %331 = vmatprep.mubr.bf16.mxu0 %v220
    %332 = vmatmul.mubr.bf16.gmra.mxu0 %v219
    %v333 = vpop.f32.mrf.mxu0
    %v334 = vadd.f32 0.0, %v333
    %v335 = vpop.f32.mrf.mxu0
    %v336 = vadd.f32 0.0, %v335
    %v337 = vpop.f32.mrf.mxu0
    %v338 = vadd.f32 0.0, %v337
    %v339 = vpop.f32.mrf.mxu0
    %v340 = vadd.f32 0.0, %v339
    %341 = vmatprep.mubr.bf16.mxu0 %v222
    %342 = vmatmul.mubr.bf16.gmra.mxu0 %v221
    %v343 = vpop.f32.mrf.mxu0
    %v344 = vadd.f32 0.0, %v343
    %v345 = vpop.f32.mrf.mxu0
    %v346 = vadd.f32 0.0, %v345
    %v347 = vpop.f32.mrf.mxu0
    %v348 = vadd.f32 0.0, %v347
    %v349 = vpop.f32.mrf.mxu0
    %v350 = vadd.f32 0.0, %v349
    %351 = vdwg.mxu0
    %v352 = vld [vmem:[%s2] sm:$0xff]
    %v353 = vld [vmem:[%s2 + $0x8] sm:$0xff]
    %v354 = vld [vmem:[%s2 + $0x10] sm:$0xff]
    %v355 = vld [vmem:[%s2 + $0x18] sm:$0xff]
    %v356 = vld [vmem:[%s2 + $0x20] sm:$0xff]
    %v357 = vld [vmem:[%s2 + $0x28] sm:$0xff]
    %v358 = vld [vmem:[%s2 + $0x30] sm:$0xff]
    %v359 = vld [vmem:[%s2 + $0x38] sm:$0xff]
    %v360 = vld [vmem:[%s2 + $0x40] sm:$0xff]
    %v361 = vld [vmem:[%s2 + $0x48] sm:$0xff]
    %v362 = vld [vmem:[%s2 + $0x50] sm:$0xff]
    %v363 = vld [vmem:[%s2 + $0x58] sm:$0xff]
    %v364 = vld [vmem:[%s2 + $0x60] sm:$0xff]
    %v365 = vld [vmem:[%s2 + $0x68] sm:$0xff]
    %v366 = vld [vmem:[%s2 + $0x70] sm:$0xff]
    %v367 = vld [vmem:[%s2 + $0x78] sm:$0xff]
    %369 = vset.pattern.permute.xlu0 0
    %370 = vperm.xlu0 %369, %v352
    %v371 = vpop.permute.xlu0 %370
    %374 = vset.pattern.permute.xlu0 0
    %375 = vperm.xlu0 %374, %v353
    %v376 = vpop.permute.xlu0 %375
    %379 = vset.pattern.permute.xlu0 0
    %380 = vperm.xlu0 %379, %v354
    %v381 = vpop.permute.xlu0 %380
    %384 = vset.pattern.permute.xlu0 0
    %385 = vperm.xlu0 %384, %v355
    %v386 = vpop.permute.xlu0 %385
    %389 = vset.pattern.permute.xlu0 0
    %390 = vperm.xlu0 %389, %v356
    %v391 = vpop.permute.xlu0 %390
    %394 = vset.pattern.permute.xlu0 0
    %395 = vperm.xlu0 %394, %v357
    %v396 = vpop.permute.xlu0 %395
    %399 = vset.pattern.permute.xlu0 0
    %400 = vperm.xlu0 %399, %v358
    %v401 = vpop.permute.xlu0 %400
    %404 = vset.pattern.permute.xlu0 0
    %405 = vperm.xlu0 %404, %v359
    %v406 = vpop.permute.xlu0 %405
    %409 = vset.pattern.permute.xlu0 0
    %410 = vperm.xlu0 %409, %v360
    %v411 = vpop.permute.xlu0 %410
    %414 = vset.pattern.permute.xlu0 0
    %415 = vperm.xlu0 %414, %v361
    %v416 = vpop.permute.xlu0 %415
    %419 = vset.pattern.permute.xlu0 0
    %420 = vperm.xlu0 %419, %v362
    %v421 = vpop.permute.xlu0 %420
    %424 = vset.pattern.permute.xlu0 0
    %425 = vperm.xlu0 %424, %v363
    %v426 = vpop.permute.xlu0 %425
    %429 = vset.pattern.permute.xlu0 0
    %430 = vperm.xlu0 %429, %v364
    %v431 = vpop.permute.xlu0 %430
    %434 = vset.pattern.permute.xlu0 0
    %435 = vperm.xlu0 %434, %v365
    %v436 = vpop.permute.xlu0 %435
    %439 = vset.pattern.permute.xlu0 0
    %440 = vperm.xlu0 %439, %v366
    %v441 = vpop.permute.xlu0 %440
    %444 = vset.pattern.permute.xlu0 0
    %445 = vperm.xlu0 %444, %v367
    %v446 = vpop.permute.xlu0 %445
    %vm448 = vcmp.gt.f32.partialorder %v274, %v371
    %vm449 = vcmp.gt.f32.partialorder %v276, %v371
    %vm450 = vcmp.gt.f32.partialorder %v278, %v376
    %vm451 = vcmp.gt.f32.partialorder %v280, %v376
    %vm452 = vcmp.gt.f32.partialorder %v284, %v381
    %vm453 = vcmp.gt.f32.partialorder %v286, %v381
    %vm454 = vcmp.gt.f32.partialorder %v288, %v386
    %vm455 = vcmp.gt.f32.partialorder %v290, %v386
    %vm456 = vcmp.gt.f32.partialorder %v294, %v391
    %vm457 = vcmp.gt.f32.partialorder %v296, %v391
    %vm458 = vcmp.gt.f32.partialorder %v298, %v396
    %vm459 = vcmp.gt.f32.partialorder %v300, %v396
    %vm460 = vcmp.gt.f32.partialorder %v304, %v401
    %vm461 = vcmp.gt.f32.partialorder %v306, %v401
    %vm462 = vcmp.gt.f32.partialorder %v308, %v406
    %vm463 = vcmp.gt.f32.partialorder %v310, %v406
    %vm464 = vcmp.gt.f32.partialorder %v314, %v411
    %vm465 = vcmp.gt.f32.partialorder %v316, %v411
    %vm466 = vcmp.gt.f32.partialorder %v318, %v416
    %vm467 = vcmp.gt.f32.partialorder %v320, %v416
    %vm468 = vcmp.gt.f32.partialorder %v324, %v421
    %vm469 = vcmp.gt.f32.partialorder %v326, %v421
    %vm470 = vcmp.gt.f32.partialorder %v328, %v426
    %vm471 = vcmp.gt.f32.partialorder %v330, %v426
    %vm472 = vcmp.gt.f32.partialorder %v334, %v431
    %vm473 = vcmp.gt.f32.partialorder %v336, %v431
    %vm474 = vcmp.gt.f32.partialorder %v338, %v436
    %vm475 = vcmp.gt.f32.partialorder %v340, %v436
    %vm476 = vcmp.gt.f32.partialorder %v344, %v441
    %vm477 = vcmp.gt.f32.partialorder %v346, %v441
    %vm478 = vcmp.gt.f32.partialorder %v348, %v446
    %vm479 = vcmp.gt.f32.partialorder %v350, %v446
    %v480 = vsel %vm448, 1, 0
    %v481 = vsel %vm449, 1, 0
    %v482 = vsel %vm450, 1, 0
    %v483 = vsel %vm451, 1, 0
    %v484 = vsel %vm452, 1, 0
    %v485 = vsel %vm453, 1, 0
    %v486 = vsel %vm454, 1, 0
    %v487 = vsel %vm455, 1, 0
    %v488 = vsel %vm456, 1, 0
    %v489 = vsel %vm457, 1, 0
    %v490 = vsel %vm458, 1, 0
    %v491 = vsel %vm459, 1, 0
    %v492 = vsel %vm460, 1, 0
    %v493 = vsel %vm461, 1, 0
    %v494 = vsel %vm462, 1, 0
    %v495 = vsel %vm463, 1, 0
    %v496 = vsel %vm464, 1, 0
    %v497 = vsel %vm465, 1, 0
    %v498 = vsel %vm466, 1, 0
    %v499 = vsel %vm467, 1, 0
    %v500 = vsel %vm468, 1, 0
    %v501 = vsel %vm469, 1, 0
    %v502 = vsel %vm470, 1, 0
    %v503 = vsel %vm471, 1, 0
    %v504 = vsel %vm472, 1, 0
    %v505 = vsel %vm473, 1, 0
    %v506 = vsel %vm474, 1, 0
    %v507 = vsel %vm475, 1, 0
    %v508 = vsel %vm476, 1, 0
    %v509 = vsel %vm477, 1, 0
    %v510 = vsel %vm478, 1, 0
    %v511 = vsel %vm479, 1, 0
    %v512 = vcvt.s32.f32 %v480
    %v513 = vcvt.s32.f32 %v481
    %v514 = vcvt.s32.f32 %v482
    %v515 = vcvt.s32.f32 %v483
    %v516 = vcvt.s32.f32 %v484
    %v517 = vcvt.s32.f32 %v485
    %v518 = vcvt.s32.f32 %v486
    %v519 = vcvt.s32.f32 %v487
    %v520 = vcvt.s32.f32 %v488
    %v521 = vcvt.s32.f32 %v489
    %v522 = vcvt.s32.f32 %v490
    %v523 = vcvt.s32.f32 %v491
    %v524 = vcvt.s32.f32 %v492
    %v525 = vcvt.s32.f32 %v493
    %v526 = vcvt.s32.f32 %v494
    %v527 = vcvt.s32.f32 %v495
    %v528 = vcvt.s32.f32 %v496
    %v529 = vcvt.s32.f32 %v497
    %v530 = vcvt.s32.f32 %v498
    %v531 = vcvt.s32.f32 %v499
    %v532 = vcvt.s32.f32 %v500
    %v533 = vcvt.s32.f32 %v501
    %v534 = vcvt.s32.f32 %v502
    %v535 = vcvt.s32.f32 %v503
    %v536 = vcvt.s32.f32 %v504
    %v537 = vcvt.s32.f32 %v505
    %v538 = vcvt.s32.f32 %v506
    %v539 = vcvt.s32.f32 %v507
    %v540 = vcvt.s32.f32 %v508
    %v541 = vcvt.s32.f32 %v509
    %v542 = vcvt.s32.f32 %v510
    %v543 = vcvt.s32.f32 %v511
    %v544 = vpack.c.bf16 %v514, %v512
    %v545 = vpack.c.bf16 %v515, %v513
    %v546 = vpack.c.bf16 %v518, %v516
    %v547 = vpack.c.bf16 %v519, %v517
    %v548 = vpack.c.bf16 %v522, %v520
    %v549 = vpack.c.bf16 %v523, %v521
    %v550 = vpack.c.bf16 %v526, %v524
    %v551 = vpack.c.bf16 %v527, %v525
    %v552 = vpack.c.bf16 %v530, %v528
    %v553 = vpack.c.bf16 %v531, %v529
    %v554 = vpack.c.bf16 %v534, %v532
    %v555 = vpack.c.bf16 %v535, %v533
    %v556 = vpack.c.bf16 %v538, %v536
    %v557 = vpack.c.bf16 %v539, %v537
    %v558 = vpack.c.bf16 %v542, %v540
    %v559 = vpack.c.bf16 %v543, %v541
    %v560 = vld [vmem:[#allocation5] sm:$0xf]
    %v561 = vld [vmem:[#allocation5 + $0x4] sm:$0xf]
    %v562 = vld [vmem:[#allocation5 + $0x8] sm:$0xf]
    %v563 = vld [vmem:[#allocation5 + $0xc] sm:$0xf]
    %v564 = vld [vmem:[#allocation5 + $0x10] sm:$0xf]
    %v565 = vld [vmem:[#allocation5 + $0x14] sm:$0xf]
    %v566 = vld [vmem:[#allocation5 + $0x18] sm:$0xf]
    %v567 = vld [vmem:[#allocation5 + $0x1c] sm:$0xf]
    %v568 = vld [vmem:[#allocation5 + $0x20] sm:$0xf]
    %v569 = vld [vmem:[#allocation5 + $0x24] sm:$0xf]
    %v570 = vld [vmem:[#allocation5 + $0x28] sm:$0xf]
    %v571 = vld [vmem:[#allocation5 + $0x2c] sm:$0xf]
    %v572 = vld [vmem:[#allocation5 + $0x30] sm:$0xf]
    %v573 = vld [vmem:[#allocation5 + $0x34] sm:$0xf]
    %v574 = vld [vmem:[#allocation5 + $0x38] sm:$0xf]
    %v575 = vld [vmem:[#allocation5 + $0x3c] sm:$0xf]
    %v576 = vld [vmem:[#allocation5 + $0x40] sm:$0xf]
    %v577 = vld [vmem:[#allocation5 + $0x44] sm:$0xf]
    %v578 = vld [vmem:[#allocation5 + $0x48] sm:$0xf]
    %v579 = vld [vmem:[#allocation5 + $0x4c] sm:$0xf]
    %v580 = vld [vmem:[#allocation5 + $0x50] sm:$0xf]
    %v581 = vld [vmem:[#allocation5 + $0x54] sm:$0xf]
    %v582 = vld [vmem:[#allocation5 + $0x58] sm:$0xf]
    %v583 = vld [vmem:[#allocation5 + $0x5c] sm:$0xf]
    %v584 = vld [vmem:[#allocation5 + $0x60] sm:$0xf]
    %v585 = vld [vmem:[#allocation5 + $0x64] sm:$0xf]
    %v586 = vld [vmem:[#allocation5 + $0x68] sm:$0xf]
    %v587 = vld [vmem:[#allocation5 + $0x6c] sm:$0xf]
    %v588 = vld [vmem:[#allocation5 + $0x70] sm:$0xf]
    %v589 = vld [vmem:[#allocation5 + $0x74] sm:$0xf]
    %v590 = vld [vmem:[#allocation5 + $0x78] sm:$0xf]
    %v591 = vld [vmem:[#allocation5 + $0x7c] sm:$0xf]
    %v592 = vld [vmem:[#allocation5 + $0x80] sm:$0xf]
    %v593 = vld [vmem:[#allocation5 + $0x84] sm:$0xf]
    %v594 = vld [vmem:[#allocation5 + $0x88] sm:$0xf]
    %v595 = vld [vmem:[#allocation5 + $0x8c] sm:$0xf]
    %v596 = vld [vmem:[#allocation5 + $0x90] sm:$0xf]
    %v597 = vld [vmem:[#allocation5 + $0x94] sm:$0xf]
    %v598 = vld [vmem:[#allocation5 + $0x98] sm:$0xf]
    %v599 = vld [vmem:[#allocation5 + $0x9c] sm:$0xf]
    %v600 = vld [vmem:[#allocation5 + $0xa0] sm:$0xf]
    %v601 = vld [vmem:[#allocation5 + $0xa4] sm:$0xf]
    %v602 = vld [vmem:[#allocation5 + $0xa8] sm:$0xf]
    %v603 = vld [vmem:[#allocation5 + $0xac] sm:$0xf]
    %v604 = vld [vmem:[#allocation5 + $0xb0] sm:$0xf]
    %v605 = vld [vmem:[#allocation5 + $0xb4] sm:$0xf]
    %v606 = vld [vmem:[#allocation5 + $0xb8] sm:$0xf]
    %v607 = vld [vmem:[#allocation5 + $0xbc] sm:$0xf]
    %v656 = vunpack.c.l.b16 %v560
    %v657 = vunpack.c.l.b16 %v561
    %v658 = vunpack.c.l.b16 %v562
    %v659 = vunpack.c.l.b16 %v563
    %v660 = vunpack.c.l.b16 %v564
    %v661 = vunpack.c.l.b16 %v565
    %v662 = vunpack.c.l.b16 %v566
    %v663 = vunpack.c.l.b16 %v567
    %v664 = vunpack.c.l.b16 %v568
    %v665 = vunpack.c.l.b16 %v569
    %v666 = vunpack.c.l.b16 %v570
    %v667 = vunpack.c.l.b16 %v571
    %v668 = vunpack.c.l.b16 %v572
    %v669 = vunpack.c.l.b16 %v573
    %v670 = vunpack.c.l.b16 %v574
    %v671 = vunpack.c.l.b16 %v575
    %v672 = vunpack.c.l.b16 %v576
    %v673 = vunpack.c.l.b16 %v577
    %v674 = vunpack.c.l.b16 %v578
    %v675 = vunpack.c.l.b16 %v579
    %v676 = vunpack.c.l.b16 %v580
    %v677 = vunpack.c.l.b16 %v581
    %v678 = vunpack.c.l.b16 %v582
    %v679 = vunpack.c.l.b16 %v583
    %v680 = vunpack.c.l.b16 %v584
    %v681 = vunpack.c.l.b16 %v585
    %v682 = vunpack.c.l.b16 %v586
    %v683 = vunpack.c.l.b16 %v587
    %v684 = vunpack.c.l.b16 %v588
    %v685 = vunpack.c.l.b16 %v589
    %v686 = vunpack.c.l.b16 %v590
    %v687 = vunpack.c.l.b16 %v591
    %v688 = vunpack.c.l.b16 %v592
    %v689 = vunpack.c.l.b16 %v593
    %v690 = vunpack.c.l.b16 %v594
    %v691 = vunpack.c.l.b16 %v595
    %v692 = vunpack.c.l.b16 %v596
    %v693 = vunpack.c.l.b16 %v597
    %v694 = vunpack.c.l.b16 %v598
    %v695 = vunpack.c.l.b16 %v599
    %v696 = vunpack.c.l.b16 %v600
    %v697 = vunpack.c.l.b16 %v601
    %v698 = vunpack.c.l.b16 %v602
    %v699 = vunpack.c.l.b16 %v603
    %v700 = vunpack.c.l.b16 %v604
    %v701 = vunpack.c.l.b16 %v605
    %v702 = vunpack.c.l.b16 %v606
    %v703 = vunpack.c.l.b16 %v607
    %v704 = vpack.c.b16 %v657, %v656
    %v705 = vpack.c.b16 %v659, %v658
    %v706 = vpack.c.b16 %v661, %v660
    %v707 = vpack.c.b16 %v663, %v662
    %v708 = vpack.c.b16 %v665, %v664
    %v709 = vpack.c.b16 %v667, %v666
    %v710 = vpack.c.b16 %v669, %v668
    %v711 = vpack.c.b16 %v671, %v670
    %v712 = vpack.c.b16 %v673, %v672
    %v713 = vpack.c.b16 %v675, %v674
    %v714 = vpack.c.b16 %v677, %v676
    %v715 = vpack.c.b16 %v679, %v678
    %v716 = vpack.c.b16 %v681, %v680
    %v717 = vpack.c.b16 %v683, %v682
    %v718 = vpack.c.b16 %v685, %v684
    %v719 = vpack.c.b16 %v687, %v686
    %v720 = vpack.c.b16 %v689, %v688
    %v721 = vpack.c.b16 %v691, %v690
    %v722 = vpack.c.b16 %v693, %v692
    %v723 = vpack.c.b16 %v695, %v694
    %v724 = vpack.c.b16 %v697, %v696
    %v725 = vpack.c.b16 %v699, %v698
    %v726 = vpack.c.b16 %v701, %v700
    %v727 = vpack.c.b16 %v703, %v702
    %752 = vmatprep.subr.bf16.mxu0 %v559
    %753 = vmatpush1.bf16.msra.mxu0 %v558
    %754 = vmatprep.subr.bf16.mxu0 %v557
    %755 = vmatpush1.bf16.msra.mxu0 %v556
    %756 = vmatprep.subr.bf16.mxu0 %v555
    %757 = vmatpush1.bf16.msra.mxu0 %v554
    %758 = vmatprep.subr.bf16.mxu0 %v553
    %759 = vmatpush1.bf16.msra.mxu0 %v552
    %760 = vmatprep.subr.bf16.mxu0 %v551
    %761 = vmatpush1.bf16.msra.mxu0 %v550
    %762 = vmatprep.subr.bf16.mxu0 %v549
    %763 = vmatpush1.bf16.msra.mxu0 %v548
    %764 = vmatprep.subr.bf16.mxu0 %v547
    %765 = vmatpush1.bf16.msra.mxu0 %v546
    %766 = vmatprep.subr.bf16.mxu0 %v545
    %767 = vmatpush1.bf16.msra.mxu0 %v544
    %768 = vmatprep.subr.bf16.mxu0 0
    %769 = vmatpush2.bf16.msra.mxu0 0
    %770 = vmatprep.subr.bf16.mxu0 0
    %771 = vmatpush2.bf16.msra.mxu0 0
    %772 = vmatprep.subr.bf16.mxu0 0
    %773 = vmatpush2.bf16.msra.mxu0 0
    %774 = vmatprep.subr.bf16.mxu0 0
    %775 = vmatpush2.bf16.msra.mxu0 0
    %776 = vmatprep.subr.bf16.mxu0 0
    %777 = vmatpush2.bf16.msra.mxu0 0
    %778 = vmatprep.subr.bf16.mxu0 0
    %779 = vmatpush2.bf16.msra.mxu0 0
    %780 = vmatprep.subr.bf16.mxu0 0
    %781 = vmatpush2.bf16.msra.mxu0 0
    %782 = vmatprep.subr.bf16.mxu0 0
    %783 = vmatpush2.bf16.msra.mxu0 0
    %784 = vmatprep.mubr.bf16.mxu0 0
    %785 = vmatmul.mubr.bf16.gmra.mxu0 %v704
    %v786 = vpop.f32.mrf.mxu0
    %v787 = vadd.f32 0.0, %v786
    %v788 = vpop.f32.mrf.mxu0
    %v789 = vadd.f32 0.0, %v788
    %v790 = vpop.f32.mrf.mxu0
    %v791 = vadd.f32 0.0, %v790
    %v792 = vpop.f32.mrf.mxu0
    %v793 = vadd.f32 0.0, %v792
    %794 = vmatprep.mubr.bf16.mxu0 0
    %795 = vmatmul.mubr.bf16.gmra.mxu0 %v705
    %v796 = vpop.f32.mrf.mxu0
    %v797 = vadd.f32 0.0, %v796
    %v798 = vpop.f32.mrf.mxu0
    %v799 = vadd.f32 0.0, %v798
    %v800 = vpop.f32.mrf.mxu0
    %v801 = vadd.f32 0.0, %v800
    %v802 = vpop.f32.mrf.mxu0
    %v803 = vadd.f32 0.0, %v802
    %804 = vmatprep.mubr.bf16.mxu0 0
    %805 = vmatmul.mubr.bf16.gmra.mxu0 %v706
    %v806 = vpop.f32.mrf.mxu0
    %v807 = vadd.f32 0.0, %v806
    %v808 = vpop.f32.mrf.mxu0
    %v809 = vadd.f32 0.0, %v808
    %v810 = vpop.f32.mrf.mxu0
    %v811 = vadd.f32 0.0, %v810
    %v812 = vpop.f32.mrf.mxu0
    %v813 = vadd.f32 0.0, %v812
    %814 = vmatprep.mubr.bf16.mxu0 0
    %815 = vmatmul.mubr.bf16.gmra.mxu0 %v707
    %v816 = vpop.f32.mrf.mxu0
    %v817 = vadd.f32 0.0, %v816
    %v818 = vpop.f32.mrf.mxu0
    %v819 = vadd.f32 0.0, %v818
    %v820 = vpop.f32.mrf.mxu0
    %v821 = vadd.f32 0.0, %v820
    %v822 = vpop.f32.mrf.mxu0
    %v823 = vadd.f32 0.0, %v822
    %824 = vmatprep.mubr.bf16.mxu0 0
    %825 = vmatmul.mubr.bf16.gmra.mxu0 %v708
    %v826 = vpop.f32.mrf.mxu0
    %v827 = vadd.f32 0.0, %v826
    %v828 = vpop.f32.mrf.mxu0
    %v829 = vadd.f32 0.0, %v828
    %v830 = vpop.f32.mrf.mxu0
    %v831 = vadd.f32 0.0, %v830
    %v832 = vpop.f32.mrf.mxu0
    %v833 = vadd.f32 0.0, %v832
    %834 = vmatprep.mubr.bf16.mxu0 0
    %835 = vmatmul.mubr.bf16.gmra.mxu0 %v709
    %v836 = vpop.f32.mrf.mxu0
    %v837 = vadd.f32 0.0, %v836
    %v838 = vpop.f32.mrf.mxu0
    %v839 = vadd.f32 0.0, %v838
    %v840 = vpop.f32.mrf.mxu0
    %v841 = vadd.f32 0.0, %v840
    %v842 = vpop.f32.mrf.mxu0
    %v843 = vadd.f32 0.0, %v842
    %844 = vmatprep.mubr.bf16.mxu0 0
    %845 = vmatmul.mubr.bf16.gmra.mxu0 %v710
    %v846 = vpop.f32.mrf.mxu0
    %v847 = vadd.f32 0.0, %v846
    %v848 = vpop.f32.mrf.mxu0
    %v849 = vadd.f32 0.0, %v848
    %v850 = vpop.f32.mrf.mxu0
    %v851 = vadd.f32 0.0, %v850
    %v852 = vpop.f32.mrf.mxu0
    %v853 = vadd.f32 0.0, %v852
    %854 = vmatprep.mubr.bf16.mxu0 0
    %855 = vmatmul.mubr.bf16.gmra.mxu0 %v711
    %v856 = vpop.f32.mrf.mxu0
    %v857 = vadd.f32 0.0, %v856
    %v858 = vpop.f32.mrf.mxu0
    %v859 = vadd.f32 0.0, %v858
    %v860 = vpop.f32.mrf.mxu0
    %v861 = vadd.f32 0.0, %v860
    %v862 = vpop.f32.mrf.mxu0
    %v863 = vadd.f32 0.0, %v862
    %864 = vmatprep.mubr.bf16.mxu0 0
    %865 = vmatmul.mubr.bf16.gmra.mxu0 %v712
    %v866 = vpop.f32.mrf.mxu0
    %v867 = vadd.f32 0.0, %v866
    %v868 = vpop.f32.mrf.mxu0
    %v869 = vadd.f32 0.0, %v868
    %v870 = vpop.f32.mrf.mxu0
    %v871 = vadd.f32 0.0, %v870
    %v872 = vpop.f32.mrf.mxu0
    %v873 = vadd.f32 0.0, %v872
    %874 = vmatprep.mubr.bf16.mxu0 0
    %875 = vmatmul.mubr.bf16.gmra.mxu0 %v713
    %v876 = vpop.f32.mrf.mxu0
    %v877 = vadd.f32 0.0, %v876
    %v878 = vpop.f32.mrf.mxu0
    %v879 = vadd.f32 0.0, %v878
    %v880 = vpop.f32.mrf.mxu0
    %v881 = vadd.f32 0.0, %v880
    %v882 = vpop.f32.mrf.mxu0
    %v883 = vadd.f32 0.0, %v882
    %884 = vmatprep.mubr.bf16.mxu0 0
    %885 = vmatmul.mubr.bf16.gmra.mxu0 %v714
    %v886 = vpop.f32.mrf.mxu0
    %v887 = vadd.f32 0.0, %v886
    %v888 = vpop.f32.mrf.mxu0
    %v889 = vadd.f32 0.0, %v888
    %v890 = vpop.f32.mrf.mxu0
    %v891 = vadd.f32 0.0, %v890
    %v892 = vpop.f32.mrf.mxu0
    %v893 = vadd.f32 0.0, %v892
    %894 = vmatprep.mubr.bf16.mxu0 0
    %895 = vmatmul.mubr.bf16.gmra.mxu0 %v715
    %v896 = vpop.f32.mrf.mxu0
    %v897 = vadd.f32 0.0, %v896
    %v898 = vpop.f32.mrf.mxu0
    %v899 = vadd.f32 0.0, %v898
    %v900 = vpop.f32.mrf.mxu0
    %v901 = vadd.f32 0.0, %v900
    %v902 = vpop.f32.mrf.mxu0
    %v903 = vadd.f32 0.0, %v902
    %904 = vmatprep.mubr.bf16.mxu0 0
    %905 = vmatmul.mubr.bf16.gmra.mxu0 %v716
    %v906 = vpop.f32.mrf.mxu0
    %v907 = vadd.f32 0.0, %v906
    %v908 = vpop.f32.mrf.mxu0
    %v909 = vadd.f32 0.0, %v908
    %v910 = vpop.f32.mrf.mxu0
    %v911 = vadd.f32 0.0, %v910
    %v912 = vpop.f32.mrf.mxu0
    %v913 = vadd.f32 0.0, %v912
    %914 = vmatprep.mubr.bf16.mxu0 0
    %915 = vmatmul.mubr.bf16.gmra.mxu0 %v717
    %v916 = vpop.f32.mrf.mxu0
    %v917 = vadd.f32 0.0, %v916
    %v918 = vpop.f32.mrf.mxu0
    %v919 = vadd.f32 0.0, %v918
    %v920 = vpop.f32.mrf.mxu0
    %v921 = vadd.f32 0.0, %v920
    %v922 = vpop.f32.mrf.mxu0
    %v923 = vadd.f32 0.0, %v922
    %924 = vmatprep.mubr.bf16.mxu0 0
    %925 = vmatmul.mubr.bf16.gmra.mxu0 %v718
    %v926 = vpop.f32.mrf.mxu0
    %v927 = vadd.f32 0.0, %v926
    %v928 = vpop.f32.mrf.mxu0
    %v929 = vadd.f32 0.0, %v928
    %v930 = vpop.f32.mrf.mxu0
    %v931 = vadd.f32 0.0, %v930
    %v932 = vpop.f32.mrf.mxu0
    %v933 = vadd.f32 0.0, %v932
    %934 = vmatprep.mubr.bf16.mxu0 0
    %935 = vmatmul.mubr.bf16.gmra.mxu0 %v719
    %v936 = vpop.f32.mrf.mxu0
    %v937 = vadd.f32 0.0, %v936
    %v938 = vpop.f32.mrf.mxu0
    %v939 = vadd.f32 0.0, %v938
    %v940 = vpop.f32.mrf.mxu0
    %v941 = vadd.f32 0.0, %v940
    %v942 = vpop.f32.mrf.mxu0
    %v943 = vadd.f32 0.0, %v942
    %944 = vmatprep.mubr.bf16.mxu0 0
    %945 = vmatmul.mubr.bf16.gmra.mxu0 %v720
    %v946 = vpop.f32.mrf.mxu0
    %v947 = vadd.f32 0.0, %v946
    %v948 = vpop.f32.mrf.mxu0
    %v949 = vadd.f32 0.0, %v948
    %v950 = vpop.f32.mrf.mxu0
    %v951 = vadd.f32 0.0, %v950
    %v952 = vpop.f32.mrf.mxu0
    %v953 = vadd.f32 0.0, %v952
    %954 = vmatprep.mubr.bf16.mxu0 0
    %955 = vmatmul.mubr.bf16.gmra.mxu0 %v721
    %v956 = vpop.f32.mrf.mxu0
    %v957 = vadd.f32 0.0, %v956
    %v958 = vpop.f32.mrf.mxu0
    %v959 = vadd.f32 0.0, %v958
    %v960 = vpop.f32.mrf.mxu0
    %v961 = vadd.f32 0.0, %v960
    %v962 = vpop.f32.mrf.mxu0
    %v963 = vadd.f32 0.0, %v962
    %964 = vmatprep.mubr.bf16.mxu0 0
    %965 = vmatmul.mubr.bf16.gmra.mxu0 %v722
    %v966 = vpop.f32.mrf.mxu0
    %v967 = vadd.f32 0.0, %v966
    %v968 = vpop.f32.mrf.mxu0
    %v969 = vadd.f32 0.0, %v968
    %v970 = vpop.f32.mrf.mxu0
    %v971 = vadd.f32 0.0, %v970
    %v972 = vpop.f32.mrf.mxu0
    %v973 = vadd.f32 0.0, %v972
    %974 = vmatprep.mubr.bf16.mxu0 0
    %975 = vmatmul.mubr.bf16.gmra.mxu0 %v723
    %v976 = vpop.f32.mrf.mxu0
    %v977 = vadd.f32 0.0, %v976
    %v978 = vpop.f32.mrf.mxu0
    %v979 = vadd.f32 0.0, %v978
    %v980 = vpop.f32.mrf.mxu0
    %v981 = vadd.f32 0.0, %v980
    %v982 = vpop.f32.mrf.mxu0
    %v983 = vadd.f32 0.0, %v982
    %984 = vmatprep.mubr.bf16.mxu0 0
    %985 = vmatmul.mubr.bf16.gmra.mxu0 %v724
    %v986 = vpop.f32.mrf.mxu0
    %v987 = vadd.f32 0.0, %v986
    %v988 = vpop.f32.mrf.mxu0
    %v989 = vadd.f32 0.0, %v988
    %v990 = vpop.f32.mrf.mxu0
    %v991 = vadd.f32 0.0, %v990
    %v992 = vpop.f32.mrf.mxu0
    %v993 = vadd.f32 0.0, %v992
    %994 = vmatprep.mubr.bf16.mxu0 0
    %995 = vmatmul.mubr.bf16.gmra.mxu0 %v725
    %v996 = vpop.f32.mrf.mxu0
    %v997 = vadd.f32 0.0, %v996
    %v998 = vpop.f32.mrf.mxu0
    %v999 = vadd.f32 0.0, %v998
    %v1000 = vpop.f32.mrf.mxu0
    %v1001 = vadd.f32 0.0, %v1000
    %v1002 = vpop.f32.mrf.mxu0
    %v1003 = vadd.f32 0.0, %v1002
    %1004 = vmatprep.mubr.bf16.mxu0 0
    %1005 = vmatmul.mubr.bf16.gmra.mxu0 %v726
    %v1006 = vpop.f32.mrf.mxu0
    %v1007 = vadd.f32 0.0, %v1006
    %v1008 = vpop.f32.mrf.mxu0
    %v1009 = vadd.f32 0.0, %v1008
    %v1010 = vpop.f32.mrf.mxu0
    %v1011 = vadd.f32 0.0, %v1010
    %v1012 = vpop.f32.mrf.mxu0
    %v1013 = vadd.f32 0.0, %v1012
    %1014 = vmatprep.mubr.bf16.mxu0 0
    %1015 = vmatmul.mubr.bf16.gmra.mxu0 %v727
    %v1016 = vpop.f32.mrf.mxu0
    %v1017 = vadd.f32 0.0, %v1016
    %v1018 = vpop.f32.mrf.mxu0
    %v1019 = vadd.f32 0.0, %v1018
    %v1020 = vpop.f32.mrf.mxu0
    %v1021 = vadd.f32 0.0, %v1020
    %v1022 = vpop.f32.mrf.mxu0
    %v1023 = vadd.f32 0.0, %v1022
    %1024 = vdwg.mxu0
    %v1025 = vmul.f32 %v787, %v867
    %v1026 = vmul.f32 %v789, %v869
    %v1027 = vmul.f32 %v791, %v871
    %v1028 = vmul.f32 %v793, %v873
    %v1029 = vmul.f32 %v797, %v877
    %v1030 = vmul.f32 %v799, %v879
    %v1031 = vmul.f32 %v801, %v881
    %v1032 = vmul.f32 %v803, %v883
    %v1033 = vmul.f32 %v807, %v887
    %v1034 = vmul.f32 %v809, %v889
    %v1035 = vmul.f32 %v811, %v891
    %v1036 = vmul.f32 %v813, %v893
    %v1037 = vmul.f32 %v817, %v897
    %v1038 = vmul.f32 %v819, %v899
    %v1039 = vmul.f32 %v821, %v901
    %v1040 = vmul.f32 %v823, %v903
    %v1041 = vmul.f32 %v827, %v907
    %v1042 = vmul.f32 %v829, %v909
    %v1043 = vmul.f32 %v831, %v911
    %v1044 = vmul.f32 %v833, %v913
    %v1045 = vmul.f32 %v837, %v917
    %v1046 = vmul.f32 %v839, %v919
    %v1047 = vmul.f32 %v841, %v921
    %v1048 = vmul.f32 %v843, %v923
    %v1049 = vmul.f32 %v847, %v927
    %v1050 = vmul.f32 %v849, %v929
    %v1051 = vmul.f32 %v851, %v931
    %v1052 = vmul.f32 %v853, %v933
    %v1053 = vmul.f32 %v857, %v937
    %v1054 = vmul.f32 %v859, %v939
    %v1055 = vmul.f32 %v861, %v941
    %v1056 = vmul.f32 %v863, %v943
    %v1057 = vmul.f32 %v1025, %v947
    %v1058 = vmul.f32 %v1026, %v949
    %v1059 = vmul.f32 %v1027, %v951
    %v1060 = vmul.f32 %v1028, %v953
    %v1061 = vmul.f32 %v1029, %v957
    %v1062 = vmul.f32 %v1030, %v959
    %v1063 = vmul.f32 %v1031, %v961
    %v1064 = vmul.f32 %v1032, %v963
    %v1065 = vmul.f32 %v1033, %v967
    %v1066 = vmul.f32 %v1034, %v969
    %v1067 = vmul.f32 %v1035, %v971
    %v1068 = vmul.f32 %v1036, %v973
    %v1069 = vmul.f32 %v1037, %v977
    %v1070 = vmul.f32 %v1038, %v979
    %v1071 = vmul.f32 %v1039, %v981
    %v1072 = vmul.f32 %v1040, %v983
    %v1073 = vmul.f32 %v1041, %v987
    %v1074 = vmul.f32 %v1042, %v989
    %v1075 = vmul.f32 %v1043, %v991
    %v1076 = vmul.f32 %v1044, %v993
    %v1077 = vmul.f32 %v1045, %v997
    %v1078 = vmul.f32 %v1046, %v999
    %v1079 = vmul.f32 %v1047, %v1001
    %v1080 = vmul.f32 %v1048, %v1003
    %v1081 = vmul.f32 %v1049, %v1007
    %v1082 = vmul.f32 %v1050, %v1009
    %v1083 = vmul.f32 %v1051, %v1011
    %v1084 = vmul.f32 %v1052, %v1013
    %v1085 = vmul.f32 %v1053, %v1017
    %v1086 = vmul.f32 %v1054, %v1019
    %v1087 = vmul.f32 %v1055, %v1021
    %v1088 = vmul.f32 %v1056, %v1023
    %v1089 = vadd.f32 %v1057, %v1059
    %v1090 = vadd.f32 %v1089, %v1061
    %v1091 = vadd.f32 %v1090, %v1063
    %v1092 = vadd.f32 %v1091, %v1065
    %v1093 = vadd.f32 %v1092, %v1067
    %v1094 = vadd.f32 %v1093, %v1069
    %v1095 = vadd.f32 %v1094, %v1071
    %v1096 = vadd.f32 %v1095, %v1073
    %v1097 = vadd.f32 %v1096, %v1075
    %v1098 = vadd.f32 %v1097, %v1077
    %v1099 = vadd.f32 %v1098, %v1079
    %v1100 = vadd.f32 %v1099, %v1081
    %v1101 = vadd.f32 %v1100, %v1083
    %v1102 = vadd.f32 %v1101, %v1085
    %v1103 = vadd.f32 %v1102, %v1087
    %v1104 = vrot.slane %v1103, 4
    %v1105 = vadd.f32 %v1103, %v1104
    %v1106 = vrot.slane %v1105, 2
    %v1107 = vadd.f32 %v1105, %v1106
    %v1108 = vrot.slane %v1107, 1
    %v1109 = vadd.f32 %v1107, %v1108
    %v1110 = vadd.f32 %v1058, %v1060
    %v1111 = vadd.f32 %v1110, %v1062
    %v1112 = vadd.f32 %v1111, %v1064
    %v1113 = vadd.f32 %v1112, %v1066
    %v1114 = vadd.f32 %v1113, %v1068
    %v1115 = vadd.f32 %v1114, %v1070
    %v1116 = vadd.f32 %v1115, %v1072
    %v1117 = vadd.f32 %v1116, %v1074
    %v1118 = vadd.f32 %v1117, %v1076
    %v1119 = vadd.f32 %v1118, %v1078
    %v1120 = vadd.f32 %v1119, %v1080
    %v1121 = vadd.f32 %v1120, %v1082
    %v1122 = vadd.f32 %v1121, %v1084
    %v1123 = vadd.f32 %v1122, %v1086
    %v1124 = vadd.f32 %v1123, %v1088
    %v1125 = vrot.slane %v1124, 4
    %v1126 = vadd.f32 %v1124, %v1125
    %v1127 = vrot.slane %v1126, 2
    %v1128 = vadd.f32 %v1126, %v1127
    %v1129 = vrot.slane %v1128, 1
    %v1130 = vadd.f32 %v1128, %v1129
    %v1131 = vadd.f32 %v1109, 0.5
    %v1132 = vadd.f32 %v1130, 0.5
    %v1135 = vcombine.low %v1131, %v1132
    %v1137 = vunpack.c.l.s4 1966171168
    %v1138 = vunpack.c.0.s8 %v1137
    %v1139 = vlaneseq
    %v1140 = vshrl.u32 %v1139, 7
    %v1141 = vsub.s32 %v1138, %v1140
    %v1142 = vrot.slane %v1135, %v1141
    %v1144 = vunpack.c.l.s4 1966171168
    %v1145 = vunpack.c.0.s8 %v1144
    %v1146 = vlaneseq
    %v1147 = vshrl.u32 %v1146, 7
    %v1148 = vsub.s32 %v1145, %v1147
    %v1149 = vrot.slane %v1142, %v1148
    %v1151 = vlaneseq
    %vm1152 = vcmp.ge.s32.totalorder %v1151, 0
    %vm1153 = vcmp.lt.s32.totalorder %v1151, 256
    %vm1154 = vmand %vm1152, %vm1153
    %1155 = vst.msk [vmem:[#allocation7] sm:$0x3] %vm1154, %v1149
    // Predicated region
    $region26: #{xgb_predict.1} parent=1 // pred_check
      _
    $region27: #{xgb_predict.1} parent=1 // pred_check_branch
      %1157 = sbr.rel (0) target = $region29
    $region28: #{xgb_predict.1} parent=1 // pred_region
      %s1159 = ssub.s32 32, 32
      %1160 = vsyncadd [#allocation4], %s1159
      %s1162 = sshll.u32 [#allocation7], 4
      %s1163 = int_to_ptr.vmem [resolvable:$true] %s1162
      %1165 = dma.vmem_to_hbm [thread:$0]  %s1163, 32, %s4, [#allocation4]
    $region29: #{xgb_predict.1} parent=1 // pred_fallthru
      _
    // Predicated region
    $region30: #{xgb_predict.1} parent=1 // pred_check
      _
    $region31: #{xgb_predict.1} parent=1 // pred_check_branch
      %1167 = sbr.rel (0) target = $region33
    $region32: #{xgb_predict.1} parent=1 // pred_region
      %1168 = dma.done [#allocation4], 32
    $region33: #{xgb_predict.1} parent=1 // pred_fallthru
      _
    %1169 = vsyncpa [#allocation3], 1
    %1170 = vsyncpa [#allocation6], 1
    %1171 = vsyncpa [#allocation4], 1

</llo_original>
